<compile_context>
chip_gen: v5e
topology: v5e:2x2
jax: 0.10.0
libtpu: 0.0.40
codegen_flags: <defaults>
</compile_context>

<pallas_src>
import jax
import jax.numpy as jnp
from jax import lax
from jax.experimental import pallas as pl
from jax.experimental.pallas import tpu as pltpu

P_DROP = 0.1                     # Dropout(p=0.1); fresh module => training mode
_SCALE = 1.0 / (1.0 - P_DROP)    # inverted-dropout scaling of kept values
# Drop iff uniform < p, using the low 31 bits of the hash as uniform [0, 2^31).
# int() truncates (bias ~4e-10 in keep prob) — negligible.
_KEEP_THRESHOLD = int(P_DROP * float(2 ** 31))
_TILE_ROWS = 1024                # 1024*128*4B = 512 KiB/buffer; ~2 MiB with
                                 # double-buffered in+out -> fits every VMEM.


def _i32(v):
    """Python uint32 constant -> two's-complement jnp.int32 scalar."""
    v &= 0xFFFFFFFF
    return jnp.int32(v - 0x100000000 if v >= 0x80000000 else v)


def _relu_dropout_kernel(seed_ref, x_ref, o_ref):
    tile_rows, lanes = x_ref.shape
    i = pl.program_id(0)

    # Unique per-element counter across the whole slab (int32 wrap is fine for
    # realistic activation sizes; OOB tail elements of a ragged last tile are
    # masked on write by Pallas).
    row_ids = lax.broadcasted_iota(jnp.int32, (tile_rows, lanes), 0)
    lane_ids = lax.broadcasted_iota(jnp.int32, (tile_rows, lanes), 1)
    ctr = (i * tile_rows + row_ids) * lanes + lane_ids

    # murmur3 fmix32 finalizer, keyed by the host seed (golden-ratio offset).
    h = ctr + seed_ref[0] * _i32(0x9E3779B9)
    h = h ^ lax.shift_right_logical(h, jnp.int32(16))
    h = h * _i32(0x85EBCA6B)
    h = h ^ lax.shift_right_logical(h, jnp.int32(13))
    h = h * _i32(0xC2B2AE35)
    h = h ^ lax.shift_right_logical(h, jnp.int32(16))
    r = h & jnp.int32(0x7FFFFFFF)          # uniform in [0, 2^31)
    keep = r >= jnp.int32(_KEEP_THRESHOLD)  # keep with prob (1 - p)

    x = x_ref[...]
    scale = jnp.asarray(_SCALE, x.dtype)
    # ReLU fused with the dropout select folded into a single multiply.
    o_ref[...] = jnp.maximum(x, 0) * (keep.astype(x.dtype) * scale)


def _round_up(n, m):
    return ((n + m - 1) // m) * m


def relu_dropout(x, seed=0):
    """ReLU followed by training-mode Dropout(p=0.1) in one Pallas kernel."""
    orig_shape = x.shape
    orig_dtype = x.dtype
    n = x.size

    flat = x.reshape(-1)
    rem = n % 128
    if rem:
        # Only pad to the lane width when strictly needed (not for 256*28*28).
        flat = jnp.pad(flat, (0, 128 - rem))
    x2d = flat.reshape(-1, 128)
    rows = x2d.shape[0]

    tile_rows = min(_TILE_ROWS, _round_up(rows, 8))
    grid = (pl.cdiv(rows, tile_rows),)

    seed_arr = jnp.array([seed], dtype=jnp.int32)

    out2d = pl.pallas_call(
        _relu_dropout_kernel,
        out_shape=jax.ShapeDtypeStruct((rows, 128), orig_dtype),
        grid_spec=pltpu.PrefetchScalarGridSpec(
            num_scalar_prefetch=1,
            grid=grid,
            in_specs=[pl.BlockSpec((tile_rows, 128), lambda i, seed: (i, 0))],
            out_specs=pl.BlockSpec((tile_rows, 128), lambda i, seed: (i, 0)),
        ),
        compiler_params=pltpu.CompilerParams(
            dimension_semantics=("parallel",)),  # megacore-shardable on v7x
    )(seed_arr, x2d)

    out = out2d.reshape(-1)
    if rem:
        out = out[:n]
    return out.reshape(orig_shape)


if __name__ == "__main__":
    # Small NCHW shape consistent with the module's [1, 256, 28, 28] input
    # (total elements divisible by 128, so the wrapper takes the pad-free path).
    key = jax.random.PRNGKey(0)
    x = jax.random.normal(key, (1, 32, 16, 16), dtype=jnp.float32)

    out = relu_dropout(x, seed=0)
    out = jax.block_until_ready(out)

    assert out.shape == x.shape
    # ReLU guarantees non-negative outputs.
    assert bool(jnp.all(out >= 0.0))
    # Every output is either dropped (0) or relu(x) scaled by 1/(1-p).
    expected = jnp.maximum(x, 0.0) * _SCALE
    ok = jnp.logical_or(jnp.isclose(out, 0.0, atol=1e-6),
                        jnp.isclose(out, expected, rtol=1e-5, atol=1e-6))
    assert bool(jnp.all(ok))
    # Dropout actually drops a plausible fraction of strictly-positive inputs.
    pos = x > 0.0
    dropped_frac = jnp.sum(jnp.logical_and(pos, out == 0.0)) / jnp.sum(pos)
    assert 0.02 < float(dropped_frac) < 0.25

    print("KERNEL_OK")
</pallas_src>

<mosaic_0001>
module attributes {stable_mosaic.version = 11 : i64} {
  func.func @_relu_dropout_kernel(%arg0: i32, %arg1: memref<1xi32, #tpu.memory_space<smem>>, %arg2: memref<64x128xf32, #tpu.memory_space<vmem>>, %arg3: memref<64x128xf32, #tpu.memory_space<vmem>>) attributes {dimension_semantics = [#tpu.dimension_semantics<parallel>], iteration_bounds = array<i64: 1>, scalar_prefetch = 1 : i64, scratch_operands = 0 : i64, tpu.core_type = #tpu.core_type<tc>, window_params = [{transform_indices = @transform_0, window_bounds = array<i64: 64, 128>}, {transform_indices = @transform_1, window_bounds = array<i64: 64, 128>}]} {
    %0 = tpu.iota {dimensions = array<i32: 0>} : vector<64x128xi32>
    %1 = tpu.iota {dimensions = array<i32: 1>} : vector<64x128xi32>
    %c64_i32 = arith.constant 64 : i32
    %2 = arith.muli %arg0, %c64_i32 : i32
    %3 = vector.broadcast %2 : i32 to vector<64x128xi32>
    %4 = arith.addi %3, %0 : vector<64x128xi32>
    %c128_i32 = arith.constant 128 : i32
    %5 = vector.broadcast %c128_i32 : i32 to vector<64x128xi32>
    %6 = arith.muli %4, %5 : vector<64x128xi32>
    %7 = arith.addi %6, %1 : vector<64x128xi32>
    %c0 = arith.constant 0 : index
    %8 = memref.load %arg1[%c0] : memref<1xi32, #tpu.memory_space<smem>>
    %c-1640531527_i32 = arith.constant -1640531527 : i32
    %9 = arith.muli %8, %c-1640531527_i32 : i32
    %10 = vector.broadcast %9 : i32 to vector<64x128xi32>
    %11 = arith.addi %7, %10 : vector<64x128xi32>
    %c16_i32 = arith.constant 16 : i32
    %12 = vector.broadcast %c16_i32 : i32 to vector<64x128xi32>
    %13 = arith.shrui %11, %12 : vector<64x128xi32>
    %14 = arith.xori %11, %13 : vector<64x128xi32>
    %c-2048144789_i32 = arith.constant -2048144789 : i32
    %15 = vector.broadcast %c-2048144789_i32 : i32 to vector<64x128xi32>
    %16 = arith.muli %14, %15 : vector<64x128xi32>
    %c13_i32 = arith.constant 13 : i32
    %17 = vector.broadcast %c13_i32 : i32 to vector<64x128xi32>
    %18 = arith.shrui %16, %17 : vector<64x128xi32>
    %19 = arith.xori %16, %18 : vector<64x128xi32>
    %c-1028477387_i32 = arith.constant -1028477387 : i32
    %20 = vector.broadcast %c-1028477387_i32 : i32 to vector<64x128xi32>
    %21 = arith.muli %19, %20 : vector<64x128xi32>
    %c16_i32_0 = arith.constant 16 : i32
    %22 = vector.broadcast %c16_i32_0 : i32 to vector<64x128xi32>
    %23 = arith.shrui %21, %22 : vector<64x128xi32>
    %24 = arith.xori %21, %23 : vector<64x128xi32>
    %c2147483647_i32 = arith.constant 2147483647 : i32
    %25 = vector.broadcast %c2147483647_i32 : i32 to vector<64x128xi32>
    %26 = arith.andi %24, %25 : vector<64x128xi32>
    %c214748364_i32 = arith.constant 214748364 : i32
    %27 = vector.broadcast %c214748364_i32 : i32 to vector<64x128xi32>
    %28 = arith.cmpi sge, %26, %27 : vector<64x128xi32>
    %c0_1 = arith.constant 0 : index
    %c0_2 = arith.constant 0 : index
    %29 = vector.load %arg2[%c0_1, %c0_2] : memref<64x128xf32, #tpu.memory_space<vmem>>, vector<64x128xf32>
    %cst = arith.constant 0.000000e+00 : f32
    %30 = vector.broadcast %cst : f32 to vector<64x128xf32>
    %31 = arith.maximumf %29, %30 : vector<64x128xf32>
    %32 = arith.extui %28 : vector<64x128xi1> to vector<64x128xi32>
    %33 = arith.sitofp %32 : vector<64x128xi32> to vector<64x128xf32>
    %cst_3 = arith.constant 1.11111116 : f32
    %34 = vector.broadcast %cst_3 : f32 to vector<64x128xf32>
    %35 = arith.mulf %33, %34 : vector<64x128xf32>
    %36 = arith.mulf %31, %35 : vector<64x128xf32>
    %c0_4 = arith.constant 0 : index
    %c0_5 = arith.constant 0 : index
    %37 = vector.load %arg3[%c0_4, %c0_5] : memref<64x128xf32, #tpu.memory_space<vmem>>, vector<64x128xf32>
    tpu.vector_store %arg3[%c0_4, %c0_5], %36 {strides = array<i32>} : memref<64x128xf32, #tpu.memory_space<vmem>>, vector<64x128xf32>,
    return
  }
  func.func @transform_0(%arg0: i32, %arg1: memref<1xi32, #tpu.memory_space<smem>>) -> (i32, i32) {
    %c0_i32 = arith.constant 0 : i32
    %c0_i32_0 = arith.constant 0 : i32
    return %arg0, %c0_i32 : i32, i32
  }
  func.func @transform_1(%arg0: i32, %arg1: memref<1xi32, #tpu.memory_space<smem>>) -> (i32, i32) {
    %c0_i32 = arith.constant 0 : i32
    %c0_i32_0 = arith.constant 0 : i32
    return %arg0, %c0_i32 : i32, i32
  }
}

</mosaic_0001>

<llo_original>
// kernel: tpu_custom_call.1
$region0: #{tpu_custom_call.1}
  #allocation0 [shape = 'u32[]', space=smem, size = 0x4, offset = 0x4, fixed_abs, tag = 'smem constant byte address 0x4 - core index']
  #allocation1 [shape = 'u32[72,128]{1,0:T(1,128)}', space=vmem, size = 0x9000, scoped, tag = 'internal scratch']
  #allocation2 [shape = 's32[1]{0}', space=sflag, size = 0x4, scoped, tag = 'scoped memory for tpu_custom_call.1']
  #allocation3 [shape = 's32[1]{0:T(128)S(6)}', space=smem, size = 0x200, scoped, tag = 'prefetched SMEM operand 0']
  %s0 = inlined_call_operand.<no memory space> [shape: s32[1], index: 0, kind: input, shape index: {}]
  %s1 = inlined_call_operand.hbm [shape: f32[64,128], index: 1, kind: input, shape index: {}]
  %s2 = inlined_call_operand.hbm [shape: f32[64,128], index: 2, kind: output, shape index: {}]
  %s3 = sld [smem:[#allocation0]]
  $region18: #{tpu_custom_call.1} parent=0
    _
  %s5 = ssub.s32 1, %s3
  %s6 = scalar_select 0, %s5, %s3
  %7 = sst [smem:[#allocation3]] %s0
  $region1: #{tpu_custom_call.1} parent=0
    #allocation4 [shape = 'u8[32768]{0}', space=vmem, size = 0x8000, scoped, tag = 'input window, operand 1, single buffered']
    #allocation5 [shape = 's32[1]{0}', space=sflag, size = 0x4, scoped, tag = 'scoped memory for tpu_custom_call.1']
    #allocation6 [shape = 's32[1]{0}', space=sflag, size = 0x4, scoped, tag = 'scoped memory for tpu_custom_call.1']
    #allocation7 [shape = 'u8[32768]{0}', space=vmem, size = 0x8000, scoped, tag = 'output window, operand 0, single buffered']
    %8 = vsyncpa [#allocation5], 0
    %9 = vsyncpa [#allocation6], 0
    // Predicated region
    $region2: #{tpu_custom_call.1} parent=1 // pred_check
      _
    $region3: #{tpu_custom_call.1} parent=1 // pred_check_branch
      %11 = sbr.rel (0) target = $region5
    $region4: #{tpu_custom_call.1} parent=1 // pred_region
      %13 = vsyncadd [#allocation5], 0
      %s14 = sshll.u32 %s1, 4
      %s15 = int_to_ptr.hbm [resolvable:$true] %s14
      %s16 = sshll.u32 [#allocation4], 4
      %s17 = int_to_ptr.vmem [resolvable:$true] %s16
      %22 = dma.hbm_to_vmem [thread:$0]  %s15, 1024, %s17, [#allocation5], 128, 128, 8
    $region5: #{tpu_custom_call.1} parent=1 // pred_fallthru
      _
    // Predicated region
    $region6: #{tpu_custom_call.1} parent=1 // pred_check
      _
    $region7: #{tpu_custom_call.1} parent=1 // pred_check_branch
      %24 = sbr.rel (0) target = $region9
    $region8: #{tpu_custom_call.1} parent=1 // pred_region
      %26 = dma.done [#allocation5], 1024
    $region9: #{tpu_custom_call.1} parent=1 // pred_fallthru
      _
    %v27 = vlaneseq
    %v28 = vshrl.u32 %v27, 7
    %v29 = vadd.s32 %v28, 8
    %v30 = vadd.s32 %v28, 16
    %v31 = vadd.s32 %v28, 24
    %v32 = vadd.s32 %v28, 32
    %v33 = vadd.s32 %v28, 40
    %v34 = vadd.s32 %v28, 48
    %v35 = vadd.s32 %v28, 56
    %v36 = vlaneseq
    %v37 = vand.u32 %v36, 127
    %s38 = smul.u32 0, 64
    %v39 = vstv %s38
    %v40 = vadd.s32 %v39, %v28
    %v41 = vadd.s32 %v39, %v29
    %v42 = vadd.s32 %v39, %v30
    %v43 = vadd.s32 %v39, %v31
    %v44 = vadd.s32 %v39, %v32
    %v45 = vadd.s32 %v39, %v33
    %v46 = vadd.s32 %v39, %v34
    %v47 = vadd.s32 %v39, %v35
    %v48 = vmul.u32 %v40, 128
    %v49 = vmul.u32 %v41, 128
    %v50 = vmul.u32 %v42, 128
    %v51 = vmul.u32 %v43, 128
    %v52 = vmul.u32 %v44, 128
    %v53 = vmul.u32 %v45, 128
    %v54 = vmul.u32 %v46, 128
    %v55 = vmul.u32 %v47, 128
    %v56 = vadd.s32 %v48, %v37
    %v57 = vadd.s32 %v49, %v37
    %v58 = vadd.s32 %v50, %v37
    %v59 = vadd.s32 %v51, %v37
    %v60 = vadd.s32 %v52, %v37
    %v61 = vadd.s32 %v53, %v37
    %v62 = vadd.s32 %v54, %v37
    %v63 = vadd.s32 %v55, %v37
    %s64 = sld [smem:[#allocation3]]
    %s65 = smul.u32 %s64, 2654435769
    %v66 = vstv %s65
    %v67 = vadd.s32 %v56, %v66
    %v68 = vadd.s32 %v57, %v66
    %v69 = vadd.s32 %v58, %v66
    %v70 = vadd.s32 %v59, %v66
    %v71 = vadd.s32 %v60, %v66
    %v72 = vadd.s32 %v61, %v66
    %v73 = vadd.s32 %v62, %v66
    %v74 = vadd.s32 %v63, %v66
    %v75 = vshrl.u32 %v67, 16
    %v76 = vshrl.u32 %v68, 16
    %v77 = vshrl.u32 %v69, 16
    %v78 = vshrl.u32 %v70, 16
    %v79 = vshrl.u32 %v71, 16
    %v80 = vshrl.u32 %v72, 16
    %v81 = vshrl.u32 %v73, 16
    %v82 = vshrl.u32 %v74, 16
    %v83 = vxor.u32 %v67, %v75
    %v84 = vxor.u32 %v68, %v76
    %v85 = vxor.u32 %v69, %v77
    %v86 = vxor.u32 %v70, %v78
    %v87 = vxor.u32 %v71, %v79
    %v88 = vxor.u32 %v72, %v80
    %v89 = vxor.u32 %v73, %v81
    %v90 = vxor.u32 %v74, %v82
    %v91 = vmul.u32 %v83, 2246822507
    %v92 = vmul.u32 %v84, 2246822507
    %v93 = vmul.u32 %v85, 2246822507
    %v94 = vmul.u32 %v86, 2246822507
    %v95 = vmul.u32 %v87, 2246822507
    %v96 = vmul.u32 %v88, 2246822507
    %v97 = vmul.u32 %v89, 2246822507
    %v98 = vmul.u32 %v90, 2246822507
    %v99 = vshrl.u32 %v91, 13
    %v100 = vshrl.u32 %v92, 13
    %v101 = vshrl.u32 %v93, 13
    %v102 = vshrl.u32 %v94, 13
    %v103 = vshrl.u32 %v95, 13
    %v104 = vshrl.u32 %v96, 13
    %v105 = vshrl.u32 %v97, 13
    %v106 = vshrl.u32 %v98, 13
    %v107 = vxor.u32 %v91, %v99
    %v108 = vxor.u32 %v92, %v100
    %v109 = vxor.u32 %v93, %v101
    %v110 = vxor.u32 %v94, %v102
    %v111 = vxor.u32 %v95, %v103
    %v112 = vxor.u32 %v96, %v104
    %v113 = vxor.u32 %v97, %v105
    %v114 = vxor.u32 %v98, %v106
    %v115 = vmul.u32 %v107, 3266489909
    %v116 = vmul.u32 %v108, 3266489909
    %v117 = vmul.u32 %v109, 3266489909
    %v118 = vmul.u32 %v110, 3266489909
    %v119 = vmul.u32 %v111, 3266489909
    %v120 = vmul.u32 %v112, 3266489909
    %v121 = vmul.u32 %v113, 3266489909
    %v122 = vmul.u32 %v114, 3266489909
    %v123 = vshrl.u32 %v115, 16
    %v124 = vshrl.u32 %v116, 16
    %v125 = vshrl.u32 %v117, 16
    %v126 = vshrl.u32 %v118, 16
    %v127 = vshrl.u32 %v119, 16
    %v128 = vshrl.u32 %v120, 16
    %v129 = vshrl.u32 %v121, 16
    %v130 = vshrl.u32 %v122, 16
    %v131 = vxor.u32 %v115, %v123
    %v132 = vxor.u32 %v116, %v124
    %v133 = vxor.u32 %v117, %v125
    %v134 = vxor.u32 %v118, %v126
    %v135 = vxor.u32 %v119, %v127
    %v136 = vxor.u32 %v120, %v128
    %v137 = vxor.u32 %v121, %v129
    %v138 = vxor.u32 %v122, %v130
    %v139 = vand.u32 %v131, 2147483647
    %v140 = vand.u32 %v132, 2147483647
    %v141 = vand.u32 %v133, 2147483647
    %v142 = vand.u32 %v134, 2147483647
    %v143 = vand.u32 %v135, 2147483647
    %v144 = vand.u32 %v136, 2147483647
    %v145 = vand.u32 %v137, 2147483647
    %v146 = vand.u32 %v138, 2147483647
    %vm147 = vcmp.ge.s32.totalorder %v139, 214748364
    %vm148 = vcmp.ge.s32.totalorder %v140, 214748364
    %vm149 = vcmp.ge.s32.totalorder %v141, 214748364
    %vm150 = vcmp.ge.s32.totalorder %v142, 214748364
    %vm151 = vcmp.ge.s32.totalorder %v143, 214748364
    %vm152 = vcmp.ge.s32.totalorder %v144, 214748364
    %vm153 = vcmp.ge.s32.totalorder %v145, 214748364
    %vm154 = vcmp.ge.s32.totalorder %v146, 214748364
    %v155 = vld [vmem:[#allocation4] sm:$0xff]
    %v156 = vld [vmem:[#allocation4 + $0x8] sm:$0xff]
    %v157 = vld [vmem:[#allocation4 + $0x10] sm:$0xff]
    %v158 = vld [vmem:[#allocation4 + $0x18] sm:$0xff]
    %v159 = vld [vmem:[#allocation4 + $0x20] sm:$0xff]
    %v160 = vld [vmem:[#allocation4 + $0x28] sm:$0xff]
    %v161 = vld [vmem:[#allocation4 + $0x30] sm:$0xff]
    %v162 = vld [vmem:[#allocation4 + $0x38] sm:$0xff]
    %v163 = vmax.f32 %v155, 0.0
    %v164 = vmax.f32 %v156, 0.0
    %v165 = vmax.f32 %v157, 0.0
    %v166 = vmax.f32 %v158, 0.0
    %v167 = vmax.f32 %v159, 0.0
    %v168 = vmax.f32 %v160, 0.0
    %v169 = vmax.f32 %v161, 0.0
    %v170 = vmax.f32 %v162, 0.0
    %v171 = vsel %vm147, 1, 0
    %v172 = vsel %vm148, 1, 0
    %v173 = vsel %vm149, 1, 0
    %v174 = vsel %vm150, 1, 0
    %v175 = vsel %vm151, 1, 0
    %v176 = vsel %vm152, 1, 0
    %v177 = vsel %vm153, 1, 0
    %v178 = vsel %vm154, 1, 0
    %v179 = vcvt.s32.f32 %v171
    %v180 = vcvt.s32.f32 %v172
    %v181 = vcvt.s32.f32 %v173
    %v182 = vcvt.s32.f32 %v174
    %v183 = vcvt.s32.f32 %v175
    %v184 = vcvt.s32.f32 %v176
    %v185 = vcvt.s32.f32 %v177
    %v186 = vcvt.s32.f32 %v178
    %v187 = vmul.f32 %v179, 1.1111112
    %v188 = vmul.f32 %v180, 1.1111112
    %v189 = vmul.f32 %v181, 1.1111112
    %v190 = vmul.f32 %v182, 1.1111112
    %v191 = vmul.f32 %v183, 1.1111112
    %v192 = vmul.f32 %v184, 1.1111112
    %v193 = vmul.f32 %v185, 1.1111112
    %v194 = vmul.f32 %v186, 1.1111112
    %v195 = vmul.f32 %v163, %v187
    %v196 = vmul.f32 %v164, %v188
    %v197 = vmul.f32 %v165, %v189
    %v198 = vmul.f32 %v166, %v190
    %v199 = vmul.f32 %v167, %v191
    %v200 = vmul.f32 %v168, %v192
    %v201 = vmul.f32 %v169, %v193
    %v202 = vmul.f32 %v170, %v194
    %203 = vst [vmem:[#allocation7] sm:$0xff] %v195
    %204 = vst [vmem:[#allocation7 + $0x8] sm:$0xff] %v196
    %205 = vst [vmem:[#allocation7 + $0x10] sm:$0xff] %v197
    %206 = vst [vmem:[#allocation7 + $0x18] sm:$0xff] %v198
    %207 = vst [vmem:[#allocation7 + $0x20] sm:$0xff] %v199
    %208 = vst [vmem:[#allocation7 + $0x28] sm:$0xff] %v200
    %209 = vst [vmem:[#allocation7 + $0x30] sm:$0xff] %v201
    %210 = vst [vmem:[#allocation7 + $0x38] sm:$0xff] %v202
    // Predicated region
    $region10: #{tpu_custom_call.1} parent=1 // pred_check
      _
    $region11: #{tpu_custom_call.1} parent=1 // pred_check_branch
      %212 = sbr.rel (0) target = $region13
    $region12: #{tpu_custom_call.1} parent=1 // pred_region
      %214 = vsyncadd [#allocation6], 0
      %s215 = sshll.u32 [#allocation7], 4
      %s216 = int_to_ptr.vmem [resolvable:$true] %s215
      %s217 = sshll.u32 %s2, 4
      %s218 = int_to_ptr.hbm [resolvable:$true] %s217
      %223 = dma.vmem_to_hbm [thread:$0]  %s216, 1024, %s218, [#allocation6], 128, 128, 8
    $region13: #{tpu_custom_call.1} parent=1 // pred_fallthru
      _
    // Predicated region
    $region14: #{tpu_custom_call.1} parent=1 // pred_check
      _
    $region15: #{tpu_custom_call.1} parent=1 // pred_check_branch
      %225 = sbr.rel (0) target = $region17
    $region16: #{tpu_custom_call.1} parent=1 // pred_region
      %227 = dma.done [#allocation6], 1024
    $region17: #{tpu_custom_call.1} parent=1 // pred_fallthru
      _
    %228 = vsyncpa [#allocation5], 1
    %229 = vsyncpa [#allocation6], 1

</llo_original>
